<compile_context>
chip_gen: v7x
topology: tpu7x:2x2x1
jax: 0.10.0
libtpu: 0.0.40
codegen_flags: <defaults>
</compile_context>

<pallas_src>
import numpy as np
import jax
import jax.numpy as jnp
from jax.experimental import pallas as pl
from jax.experimental.pallas import tpu as pltpu


STEPS = 3
BLOCK_MULTIPLIER = 3
PRIMITIVES = ["skip_connect", "conv_3x3"]
CELL_ARCH = np.array([[0, 1], [1, 1], [2, 1], [3, 0], [5, 1], [6, 0]], dtype=np.int32)

_TAP_OFFSETS = [(oy, ox) for oy in (-1, 0, 1) for ox in (-1, 0, 1)]


def _round_up(x, m):
    return ((x + m - 1) // m) * m


def _num_tensorcores_per_device():
    """Perf-only heuristic: 2 TensorCores on v7x / megacore chips, 1 on v5e / v6e."""
    try:
        kind = jax.devices()[0].device_kind.lower()
    except Exception:
        return 1
    return 2 if any(t in kind for t in ("v7", "v4", "v5p")) else 1


# ----------------------------- static cell plan -----------------------------

def _build_cell_plan(cell_arch, steps):
    """Trace-time analysis of cell_arch.

    Returns:
      plan:        plan[step] = [(state_idx, conv_slot_or_None), ...]
      n_conv:      number of conv_3x3 ops
      conv_groups: {input_state_idx: [conv_slot, ...]}  slots sharing an input state
      stack_order: conv slots in the row order their weights are stacked (group-adjacent)
      slot_pos:    {conv_slot: position in stack_order}
    """
    arch = np.asarray(cell_arch)
    branch_set = set(int(b) for b in arch[:, 0])
    plan, conv_input_state = [], {}
    n_states, offset, ops_index, conv_slot = 2, 0, 0, 0
    for _ in range(steps):
        step_ops = []
        for j in range(n_states):
            if (offset + j) in branch_set:
                prim = PRIMITIVES[int(arch[ops_index, 1])]
                if prim == "skip_connect":
                    step_ops.append((j, None))
                else:
                    step_ops.append((j, conv_slot))
                    conv_input_state[conv_slot] = j
                    conv_slot += 1
                ops_index += 1
        plan.append(step_ops)
        offset += n_states
        n_states += 1
    conv_groups = {}
    for slot in range(conv_slot):
        conv_groups.setdefault(conv_input_state[slot], []).append(slot)
    stack_order = [s for sidx in sorted(conv_groups) for s in conv_groups[sidx]]
    slot_pos = {s: i for i, s in enumerate(stack_order)}
    return plan, conv_slot, conv_groups, stack_order, slot_pos


def _build_tap_masks(H, W, n_images):
    """Precomputed SAME-padding border masks, tiled over the images folded into lanes."""
    hh, ww = np.meshgrid(np.arange(H), np.arange(W), indexing="ij")
    hh, ww = hh.reshape(-1), ww.reshape(-1)
    rows = []
    for oy, ox in _TAP_OFFSETS:
        valid = (hh + oy >= 0) & (hh + oy < H) & (ww + ox >= 0) & (ww + ox < W)
        rows.append(valid.astype(np.float32))
    m = np.stack(rows, axis=0)                        # (9, H*W)
    return jnp.asarray(np.tile(m, (1, n_images)))     # (9, n_images*H*W)


# ----------------------------- fused Pallas kernel -----------------------------

def _make_cell_kernel(C_out, H, W, n_images, plan, conv_groups, slot_pos, use_pre, n_conv):
    HW = H * W
    LANES = n_images * HW
    P01 = 2 * C_out if use_pre else C_out              # rows of the fused 1x1 weight
    o_sc01, o_bi01 = 0, P01                            # offsets into the packed affine vec
    o_csc, o_cbi = 2 * P01, 2 * P01 + n_conv * C_out

    def kernel(xin_ref, mask_ref, w01_ref, cw_ref, aff_ref, o_ref):
        x = xin_ref[...]                 # (C0p + C1p, LANES) f32   stacked [x0_pad; x1]
        mask = mask_ref[...]             # (9, LANES)        f32   precomputed tap masks
        aff = aff_ref[...]               # (2*P01 + 2*n_conv*C_out, 1) f32  packed BN params
        cw = cw_ref[...]                 # (n_conv*C_out, 9*C_out) f32     stacked conv3x3 W

        # ---- fused 1x1 preprocess: one block-diagonal matmul + one BN/ReLU pass ----
        y01 = jnp.dot(w01_ref[...], x, preferred_element_type=jnp.float32)
        y01 = jnp.maximum(y01 * aff[o_sc01:o_sc01 + P01] + aff[o_bi01:o_bi01 + P01], 0.0)
        if use_pre:
            s0, s1 = y01[:C_out], y01[C_out:2 * C_out]
        else:
            s0, s1 = x[:C_out], y01

        def im2col_bf16(xs):
            # (C_out, LANES) -> (9*C_out, LANES) bf16.  Each 3x3 tap is one XLU lane roll
            # plus one multiply by the precomputed border mask, so SAME padding never
            # touches HBM.  (Mask math uses lane % HW host-side, so taps never leak
            # across images folded into the lane dim.)
            pieces = []
            for k, (oy, ox) in enumerate(_TAP_OFFSETS):
                s = oy * W + ox
                r = xs if s == 0 else pltpu.roll(xs, (-s) % LANES, axis=1)
                pieces.append(r * mask[k:k + 1, :])
            return jnp.concatenate(pieces, axis=0).astype(jnp.bfloat16)

        conv_out = {}

        def run_conv_group(state_idx, xs):
            # All conv3x3 slots consuming `state_idx` share ONE im2col and ONE matmul.
            slots = conv_groups.get(state_idx, ())
            if not slots:
                return
            col = im2col_bf16(xs)                                   # (9*C_out, LANES) bf16
            r0 = slot_pos[slots[0]] * C_out
            nr = len(slots) * C_out
            w_blk = cw[r0:r0 + nr, :].astype(jnp.bfloat16)          # bf16 MXU inputs
            y = jnp.dot(w_blk, col, preferred_element_type=jnp.float32)
            y = jnp.maximum(y * aff[o_csc + r0:o_csc + r0 + nr]
                            + aff[o_cbi + r0:o_cbi + r0 + nr], 0.0)
            for i, slot in enumerate(slots):
                conv_out[slot] = y[i * C_out:(i + 1) * C_out, :]

        states = [s0, s1]
        run_conv_group(0, s0)
        run_conv_group(1, s1)
        for step_ops in plan:                          # static trace-time unroll of the DAG
            acc = None
            for (j, slot) in step_ops:
                t = states[j] if slot is None else conv_out[slot]
                acc = t if acc is None else acc + t    # branch add fused in-register
            states.append(acc)
            run_conv_group(len(states) - 1, acc)       # convs consuming the new state

        # fused channel concat: aligned 8-sublane, unmasked (LANES % 128 == 0) stores
        for k, st in enumerate(states[-BLOCK_MULTIPLIER:]):
            o_ref[k * C_out:(k + 1) * C_out, :] = st

    return kernel


# ------------------------------- Cell forward -------------------------------

def cell_forward(prev_prev_input, prev_input, params, C_out):
    """Fused Pallas forward.  Inputs/outputs are NCHW like the PyTorch reference."""
    N, C_pp, H, W = prev_prev_input.shape
    Np, C_prev, Hp, Wp = prev_input.shape
    assert (N, H, W) == (Np, Hp, Wp)
    HW = H * W
    use_pre = (C_pp != C_out)
    plan, n_conv, conv_groups, stack_order, slot_pos = _build_cell_plan(CELL_ARCH, STEPS)
    assert n_conv > 0

    # Chip-aware batch mapping: one grid step per TensorCore; the rest of the batch is
    # folded into the lane dimension (lane width G*HW stays a multiple of 128).
    n_tc = _num_tensorcores_per_device()
    grid_n = n_tc if (N >= n_tc and N % n_tc == 0) else N
    G = N // grid_n
    LANES = G * HW

    # Inputs: pad x0 channels to a multiple of 8, concat [x0_pad; x1] along channels,
    # then fold G images into the lane dim: (grid_n, C0p + C1p, G*HW).
    C0p = _round_up(C_pp, 8) if use_pre else C_pp      # C_pp == C_out when not use_pre
    C1p = C_prev
    x0 = prev_prev_input.reshape(N, C_pp, HW)
    if C0p != C_pp:
        x0 = jnp.pad(x0, ((0, 0), (0, C0p - C_pp), (0, 0)))
    x1 = prev_input.reshape(N, C_prev, HW)
    xin = jnp.concatenate([x0, x1], axis=1)            # (N, C0p+C1p, HW)
    Ctot = C0p + C1p
    xin = xin.reshape(grid_n, G, Ctot, HW).transpose(0, 2, 1, 3).reshape(grid_n, Ctot, LANES)

    # Fused block-diagonal 1x1 preprocess weight + packed scale/bias.
    if use_pre:
        w01 = jnp.zeros((2 * C_out, Ctot), jnp.float32)
        w01 = w01.at[:C_out, :C_pp].set(params["pre_w"])
        w01 = w01.at[C_out:, C0p:C0p + C_prev].set(params["prep_w"])
        sc01 = jnp.concatenate([params["pre_scale"], params["prep_scale"]], axis=0)
        bi01 = jnp.concatenate([params["pre_bias"], params["prep_bias"]], axis=0)
    else:
        w01 = jnp.zeros((C_out, Ctot), jnp.float32)
        w01 = w01.at[:, C0p:C0p + C_prev].set(params["prep_w"])
        sc01, bi01 = params["prep_scale"], params["prep_bias"]

    # conv3x3 weights stacked so that slots sharing an input state are row-adjacent
    # (one fused matmul per input state).  Flattened row order matches the im2col row
    # order: W_flat[co, (dy*3+dx)*Cin + ci] = w_hwio[dy, dx, ci, co].
    conv_params = [p for kind, p in params["ops"] if kind == "conv3x3"]
    cw = jnp.concatenate(
        [jnp.transpose(conv_params[s][0], (3, 0, 1, 2)).reshape(C_out, 9 * C_out)
         for s in stack_order], axis=0)                 # (n_conv*C_out, 9*C_out)
    csc = jnp.concatenate([conv_params[s][1] for s in stack_order], axis=0)
    cbi = jnp.concatenate([conv_params[s][2] for s in stack_order], axis=0)
    # All six tiny (C,1) scale/bias vectors packed into ONE input.
    affine = jnp.concatenate([sc01, bi01, csc, cbi], axis=0)

    mask = _build_tap_masks(H, W, G)                    # (9, LANES) f32, host-precomputed

    kernel = _make_cell_kernel(C_out, H, W, G, plan, conv_groups, slot_pos, use_pre, n_conv)

    # TODO(synk): for much larger H*W / C, stage the im2col col in a reused VMEM scratch
    #             and set vmem_limit_bytes explicitly (v7x has only 64 MiB physical VMEM);
    #             at these shapes the whole working set is tens of KiB, so no scratch.
    out = pl.pallas_call(
        kernel,
        out_shape=jax.ShapeDtypeStruct((grid_n, BLOCK_MULTIPLIER * C_out, LANES), jnp.float32),
        grid=(grid_n,),                                 # one grid step per TensorCore
        in_specs=[
            pl.BlockSpec((pl.Squeezed(), Ctot, LANES), lambda n: (n, 0, 0)),
            pl.BlockSpec((9, LANES), lambda n: (0, 0)),
            pl.BlockSpec(w01.shape, lambda n: (0, 0)),
            pl.BlockSpec(cw.shape, lambda n: (0, 0)),
            pl.BlockSpec(affine.shape, lambda n: (0, 0)),
        ],
        out_specs=pl.BlockSpec((pl.Squeezed(), BLOCK_MULTIPLIER * C_out, LANES),
                               lambda n: (n, 0, 0)),
        compiler_params=pltpu.CompilerParams(dimension_semantics=("parallel",)),
    )(xin, mask, w01, cw, affine)

    concat = out.reshape(grid_n, BLOCK_MULTIPLIER * C_out, G, HW)
    concat = concat.transpose(0, 2, 1, 3).reshape(N, BLOCK_MULTIPLIER * C_out, H, W)
    return prev_input, concat


# -------------------------- plain-JAX reference --------------------------

def cell_forward_reference(prev_prev_input, prev_input, params, C_out):
    def conv1x1(x, w, s, b):                      # x NCHW, w (Cout, Cin)
        y = jnp.einsum("oc,nchw->nohw", w, x)
        return jnp.maximum(y * s.reshape(1, -1, 1, 1) + b.reshape(1, -1, 1, 1), 0.0)

    def conv3x3(x, w, s, b):                      # w HWIO (3,3,Cin,Cout)
        y = jax.lax.conv_general_dilated(
            x, w, window_strides=(1, 1), padding="SAME",
            dimension_numbers=("NCHW", "HWIO", "NCHW"))
        return jnp.maximum(y * s.reshape(1, -1, 1, 1) + b.reshape(1, -1, 1, 1), 0.0)

    s0 = prev_prev_input
    s1 = prev_input
    if s0.shape[1] != C_out:
        s0 = conv1x1(s0, params["pre_w"], params["pre_scale"], params["pre_bias"])
    s1 = conv1x1(s1, params["prep_w"], params["prep_scale"], params["prep_bias"])

    states = [s0, s1]
    branch_set = set(int(r[0]) for r in CELL_ARCH)
    offset = 0
    ops_index = 0
    for _ in range(STEPS):
        new_states = []
        for j, h in enumerate(states):
            if (offset + j) in branch_set:
                kind, p = params["ops"][ops_index]
                if kind == "skip":
                    new_states.append(h)
                else:
                    w, s, b = p
                    new_states.append(conv3x3(h, w, s, b))
                ops_index += 1
        acc = new_states[0]
        for ns in new_states[1:]:
            acc = acc + ns
        offset += len(states)
        states.append(acc)
    concat = jnp.concatenate(states[-BLOCK_MULTIPLIER:], axis=1)
    return prev_input, concat


# ------------------------------- param init -------------------------------

def init_params(key, C_prev_prev, C_prev, C_out):
    keys = jax.random.split(key, 16)

    def folded_bn(k):
        gamma = jax.random.uniform(k, (C_out,), minval=0.5, maxval=1.5)
        beta = jax.random.normal(jax.random.fold_in(k, 1), (C_out,)) * 0.1
        mean = jnp.zeros((C_out,))
        var = jnp.ones((C_out,))
        scale = gamma / jnp.sqrt(var + 1e-5)
        bias = beta - mean * scale
        return (scale.reshape(C_out, 1).astype(jnp.float32),
                bias.reshape(C_out, 1).astype(jnp.float32))

    params = {}
    params["pre_w"] = (jax.random.normal(keys[0], (C_out, C_prev_prev)) * 0.1).astype(jnp.float32)
    params["pre_scale"], params["pre_bias"] = folded_bn(keys[1])
    params["prep_w"] = (jax.random.normal(keys[2], (C_out, C_prev)) * 0.1).astype(jnp.float32)
    params["prep_scale"], params["prep_bias"] = folded_bn(keys[3])

    ops = []
    kidx = 4
    for row in CELL_ARCH:
        prim = PRIMITIVES[int(row[1])]
        if prim == "skip_connect":
            ops.append(("skip", None))
        else:
            w = (jax.random.normal(keys[kidx], (3, 3, C_out, C_out)) * 0.1).astype(jnp.float32)
            s, b = folded_bn(keys[kidx + 1])
            ops.append(("conv3x3", (w, s, b)))
            kidx += 2
    params["ops"] = ops
    return params


# ---------------------------------- main ----------------------------------

if __name__ == "__main__":
    N, C_prev_prev, C_prev, C_out, H, W = 2, 6, 8, 8, 16, 16

    key = jax.random.PRNGKey(0)
    k_pp, k_p, k_params = jax.random.split(key, 3)
    prev_prev_input = jax.random.normal(k_pp, (N, C_prev_prev, H, W), dtype=jnp.float32)
    prev_input = jax.random.normal(k_p, (N, C_prev, H, W), dtype=jnp.float32)
    params = init_params(k_params, C_prev_prev, C_prev, C_out)

    # Fused Pallas forward (jitted so boundary reshapes/pads fold into one XLA program).
    fwd = jax.jit(lambda a, b: cell_forward(a, b, params, C_out))
    out_prev, out_concat = fwd(prev_prev_input, prev_input)
    out_prev = jax.block_until_ready(out_prev)
    out_concat = jax.block_until_ready(out_concat)

    # Plain-JAX reference for correctness.
    ref_prev, ref_concat = cell_forward_reference(prev_prev_input, prev_input, params, C_out)

    assert out_prev.shape == (N, C_prev, H, W)
    assert out_concat.shape == (N, BLOCK_MULTIPLIER * C_out, H, W)
    # prev_input is a pure pass-through -> bit-exact.
    np.testing.assert_allclose(np.asarray(out_prev), np.asarray(ref_prev), rtol=0, atol=0)
    # The conv3x3 matmuls feed the MXU bf16 inputs (f32 accumulation, f32 BN/ReLU/adds),
    # so the concat output is compared with a mixed-precision-appropriate tolerance.
    np.testing.assert_allclose(np.asarray(out_concat), np.asarray(ref_concat),
                               rtol=2e-2, atol=2e-2)

    print("KERNEL_OK")
</pallas_src>

<mosaic_0001>
module attributes {stable_mosaic.version = 11 : i64} {
  func.func @kernel(%arg0: i32, %arg1: memref<1x16x512xf32, #tpu.memory_space<vmem>>, %arg2: memref<9x512xf32, #tpu.memory_space<vmem>>, %arg3: memref<16x16xf32, #tpu.memory_space<vmem>>, %arg4: memref<32x72xf32, #tpu.memory_space<vmem>>, %arg5: memref<96x1xf32, #tpu.memory_space<vmem>>, %arg6: memref<1x24x512xf32, #tpu.memory_space<vmem>>) attributes {dimension_semantics = [#tpu.dimension_semantics<parallel>], iteration_bounds = array<i64: 1>, scalar_prefetch = 0 : i64, scratch_operands = 0 : i64, tpu.core_type = #tpu.core_type<tc>, window_params = [{transform_indices = @transform_0, window_bounds = array<i64: 1, 16, 512>}, {pipeline_mode = #tpu.pipeline_mode<synchronous>, transform_indices = @transform_1, window_bounds = array<i64: 9, 512>}, {pipeline_mode = #tpu.pipeline_mode<synchronous>, transform_indices = @transform_2, window_bounds = array<i64: 16, 16>}, {pipeline_mode = #tpu.pipeline_mode<synchronous>, transform_indices = @transform_3, window_bounds = array<i64: 32, 72>}, {pipeline_mode = #tpu.pipeline_mode<synchronous>, transform_indices = @transform_4, window_bounds = array<i64: 96, 1>}, {transform_indices = @transform_5, window_bounds = array<i64: 1, 24, 512>}]} {
    %c0 = arith.constant 0 : index
    %c0_0 = arith.constant 0 : index
    %c0_1 = arith.constant 0 : index
    %0 = vector.load %arg1[%c0, %c0_0, %c0_1] : memref<1x16x512xf32, #tpu.memory_space<vmem>>, vector<1x16x512xf32>
    %1 = vector.shape_cast %0 : vector<1x16x512xf32> to vector<16x512xf32>
    %c0_2 = arith.constant 0 : index
    %c0_3 = arith.constant 0 : index
    %2 = vector.load %arg2[%c0_2, %c0_3] : memref<9x512xf32, #tpu.memory_space<vmem>>, vector<9x512xf32>
    %c0_4 = arith.constant 0 : index
    %c0_5 = arith.constant 0 : index
    %3 = vector.load %arg5[%c0_4, %c0_5] : memref<96x1xf32, #tpu.memory_space<vmem>>, vector<96x1xf32>
    %c0_6 = arith.constant 0 : index
    %c0_7 = arith.constant 0 : index
    %4 = vector.load %arg4[%c0_6, %c0_7] : memref<32x72xf32, #tpu.memory_space<vmem>>, vector<32x72xf32>
    %c0_8 = arith.constant 0 : index
    %c0_9 = arith.constant 0 : index
    %5 = vector.load %arg3[%c0_8, %c0_9] : memref<16x16xf32, #tpu.memory_space<vmem>>, vector<16x16xf32>
    %cst = arith.constant dense<0.000000e+00> : vector<16x512xf32>
    %6 = tpu.matmul %5, %1, %cst {dimension_numbers = #tpu.dot_dimension_numbers<[1], [0], [0], [1], [0, 0, 1, 1], [], []>} : vector<16x16xf32>, vector<16x512xf32>, vector<16x512xf32> -> vector<16x512xf32>
    %7 = vector.extract_strided_slice %3 {offsets = [0, 0], sizes = [16, 1], strides = [1, 1]} : vector<96x1xf32> to vector<16x1xf32>
    %8 = vector.broadcast %7 : vector<16x1xf32> to vector<16x512xf32>
    %9 = arith.mulf %6, %8 : vector<16x512xf32>
    %10 = vector.extract_strided_slice %3 {offsets = [16, 0], sizes = [16, 1], strides = [1, 1]} : vector<96x1xf32> to vector<16x1xf32>
    %11 = vector.broadcast %10 : vector<16x1xf32> to vector<16x512xf32>
    %12 = arith.addf %9, %11 : vector<16x512xf32>
    %cst_10 = arith.constant 0.000000e+00 : f32
    %13 = vector.broadcast %cst_10 : f32 to vector<16x512xf32>
    %14 = arith.maximumf %12, %13 : vector<16x512xf32>
    %15 = vector.extract_strided_slice %14 {offsets = [0, 0], sizes = [8, 512], strides = [1, 1]} : vector<16x512xf32> to vector<8x512xf32>
    %16 = vector.extract_strided_slice %14 {offsets = [8, 0], sizes = [8, 512], strides = [1, 1]} : vector<16x512xf32> to vector<8x512xf32>
    %c17_i32 = arith.constant 17 : i32
    %17 = tpu.dynamic_rotate %15 by %c17_i32 dim 1 : vector<8x512xf32>, i32 -> vector<8x512xf32>
    %18 = vector.extract_strided_slice %2 {offsets = [0, 0], sizes = [1, 512], strides = [1, 1]} : vector<9x512xf32> to vector<1x512xf32>
    %19 = vector.broadcast %18 : vector<1x512xf32> to vector<8x512xf32>
    %20 = arith.mulf %17, %19 : vector<8x512xf32>
    %c16_i32 = arith.constant 16 : i32
    %21 = tpu.dynamic_rotate %15 by %c16_i32 dim 1 : vector<8x512xf32>, i32 -> vector<8x512xf32>
    %22 = vector.extract_strided_slice %2 {offsets = [1, 0], sizes = [1, 512], strides = [1, 1]} : vector<9x512xf32> to vector<1x512xf32>
    %23 = vector.broadcast %22 : vector<1x512xf32> to vector<8x512xf32>
    %24 = arith.mulf %21, %23 : vector<8x512xf32>
    %c15_i32 = arith.constant 15 : i32
    %25 = tpu.dynamic_rotate %15 by %c15_i32 dim 1 : vector<8x512xf32>, i32 -> vector<8x512xf32>
    %26 = vector.extract_strided_slice %2 {offsets = [2, 0], sizes = [1, 512], strides = [1, 1]} : vector<9x512xf32> to vector<1x512xf32>
    %27 = vector.broadcast %26 : vector<1x512xf32> to vector<8x512xf32>
    %28 = arith.mulf %25, %27 : vector<8x512xf32>
    %c1_i32 = arith.constant 1 : i32
    %29 = tpu.dynamic_rotate %15 by %c1_i32 dim 1 : vector<8x512xf32>, i32 -> vector<8x512xf32>
    %30 = vector.extract_strided_slice %2 {offsets = [3, 0], sizes = [1, 512], strides = [1, 1]} : vector<9x512xf32> to vector<1x512xf32>
    %31 = vector.broadcast %30 : vector<1x512xf32> to vector<8x512xf32>
    %32 = arith.mulf %29, %31 : vector<8x512xf32>
    %33 = vector.extract_strided_slice %2 {offsets = [4, 0], sizes = [1, 512], strides = [1, 1]} : vector<9x512xf32> to vector<1x512xf32>
    %34 = vector.broadcast %33 : vector<1x512xf32> to vector<8x512xf32>
    %35 = arith.mulf %15, %34 : vector<8x512xf32>
    %c511_i32 = arith.constant 511 : i32
    %36 = tpu.dynamic_rotate %15 by %c511_i32 dim 1 : vector<8x512xf32>, i32 -> vector<8x512xf32>
    %37 = vector.extract_strided_slice %2 {offsets = [5, 0], sizes = [1, 512], strides = [1, 1]} : vector<9x512xf32> to vector<1x512xf32>
    %38 = vector.broadcast %37 : vector<1x512xf32> to vector<8x512xf32>
    %39 = arith.mulf %36, %38 : vector<8x512xf32>
    %c497_i32 = arith.constant 497 : i32
    %40 = tpu.dynamic_rotate %15 by %c497_i32 dim 1 : vector<8x512xf32>, i32 -> vector<8x512xf32>
    %41 = vector.extract_strided_slice %2 {offsets = [6, 0], sizes = [1, 512], strides = [1, 1]} : vector<9x512xf32> to vector<1x512xf32>
    %42 = vector.broadcast %41 : vector<1x512xf32> to vector<8x512xf32>
    %43 = arith.mulf %40, %42 : vector<8x512xf32>
    %c496_i32 = arith.constant 496 : i32
    %44 = tpu.dynamic_rotate %15 by %c496_i32 dim 1 : vector<8x512xf32>, i32 -> vector<8x512xf32>
    %45 = vector.extract_strided_slice %2 {offsets = [7, 0], sizes = [1, 512], strides = [1, 1]} : vector<9x512xf32> to vector<1x512xf32>
    %46 = vector.broadcast %45 : vector<1x512xf32> to vector<8x512xf32>
    %47 = arith.mulf %44, %46 : vector<8x512xf32>
    %c495_i32 = arith.constant 495 : i32
    %48 = tpu.dynamic_rotate %15 by %c495_i32 dim 1 : vector<8x512xf32>, i32 -> vector<8x512xf32>
    %49 = vector.extract_strided_slice %2 {offsets = [8, 0], sizes = [1, 512], strides = [1, 1]} : vector<9x512xf32> to vector<1x512xf32>
    %50 = vector.broadcast %49 : vector<1x512xf32> to vector<8x512xf32>
    %51 = arith.mulf %48, %50 : vector<8x512xf32>
    %52 = tpu.concatenate %20, %24, %28, %32, %35, %39, %43, %47, %51 in 0 : vector<8x512xf32>, vector<8x512xf32>, vector<8x512xf32>, vector<8x512xf32>, vector<8x512xf32>, vector<8x512xf32>, vector<8x512xf32>, vector<8x512xf32>, vector<8x512xf32> -> vector<72x512xf32>
    %53 = arith.truncf %52 : vector<72x512xf32> to vector<72x512xbf16>
    %54 = vector.extract_strided_slice %4 {offsets = [0, 0], sizes = [24, 72], strides = [1, 1]} : vector<32x72xf32> to vector<24x72xf32>
    %55 = arith.truncf %54 : vector<24x72xf32> to vector<24x72xbf16>
    %cst_11 = arith.constant dense<0.000000e+00> : vector<24x512xf32>
    %56 = tpu.matmul %55, %53, %cst_11 {dimension_numbers = #tpu.dot_dimension_numbers<[1], [0], [0], [1], [0, 0, 1, 1], [], []>} : vector<24x72xbf16>, vector<72x512xbf16>, vector<24x512xf32> -> vector<24x512xf32>
    %57 = vector.extract_strided_slice %3 {offsets = [32, 0], sizes = [24, 1], strides = [1, 1]} : vector<96x1xf32> to vector<24x1xf32>
    %58 = vector.broadcast %57 : vector<24x1xf32> to vector<24x512xf32>
    %59 = arith.mulf %56, %58 : vector<24x512xf32>
    %60 = vector.extract_strided_slice %3 {offsets = [64, 0], sizes = [24, 1], strides = [1, 1]} : vector<96x1xf32> to vector<24x1xf32>
    %61 = vector.broadcast %60 : vector<24x1xf32> to vector<24x512xf32>
    %62 = arith.addf %59, %61 : vector<24x512xf32>
    %cst_12 = arith.constant 0.000000e+00 : f32
    %63 = vector.broadcast %cst_12 : f32 to vector<24x512xf32>
    %64 = arith.maximumf %62, %63 : vector<24x512xf32>
    %65 = vector.extract_strided_slice %64 {offsets = [0, 0], sizes = [8, 512], strides = [1, 1]} : vector<24x512xf32> to vector<8x512xf32>
    %66 = vector.extract_strided_slice %64 {offsets = [8, 0], sizes = [8, 512], strides = [1, 1]} : vector<24x512xf32> to vector<8x512xf32>
    %67 = vector.extract_strided_slice %64 {offsets = [16, 0], sizes = [8, 512], strides = [1, 1]} : vector<24x512xf32> to vector<8x512xf32>
    %c17_i32_13 = arith.constant 17 : i32
    %68 = tpu.dynamic_rotate %16 by %c17_i32_13 dim 1 : vector<8x512xf32>, i32 -> vector<8x512xf32>
    %69 = vector.extract_strided_slice %2 {offsets = [0, 0], sizes = [1, 512], strides = [1, 1]} : vector<9x512xf32> to vector<1x512xf32>
    %70 = vector.broadcast %69 : vector<1x512xf32> to vector<8x512xf32>
    %71 = arith.mulf %68, %70 : vector<8x512xf32>
    %c16_i32_14 = arith.constant 16 : i32
    %72 = tpu.dynamic_rotate %16 by %c16_i32_14 dim 1 : vector<8x512xf32>, i32 -> vector<8x512xf32>
    %73 = vector.extract_strided_slice %2 {offsets = [1, 0], sizes = [1, 512], strides = [1, 1]} : vector<9x512xf32> to vector<1x512xf32>
    %74 = vector.broadcast %73 : vector<1x512xf32> to vector<8x512xf32>
    %75 = arith.mulf %72, %74 : vector<8x512xf32>
    %c15_i32_15 = arith.constant 15 : i32
    %76 = tpu.dynamic_rotate %16 by %c15_i32_15 dim 1 : vector<8x512xf32>, i32 -> vector<8x512xf32>
    %77 = vector.extract_strided_slice %2 {offsets = [2, 0], sizes = [1, 512], strides = [1, 1]} : vector<9x512xf32> to vector<1x512xf32>
    %78 = vector.broadcast %77 : vector<1x512xf32> to vector<8x512xf32>
    %79 = arith.mulf %76, %78 : vector<8x512xf32>
    %c1_i32_16 = arith.constant 1 : i32
    %80 = tpu.dynamic_rotate %16 by %c1_i32_16 dim 1 : vector<8x512xf32>, i32 -> vector<8x512xf32>
    %81 = vector.extract_strided_slice %2 {offsets = [3, 0], sizes = [1, 512], strides = [1, 1]} : vector<9x512xf32> to vector<1x512xf32>
    %82 = vector.broadcast %81 : vector<1x512xf32> to vector<8x512xf32>
    %83 = arith.mulf %80, %82 : vector<8x512xf32>
    %84 = vector.extract_strided_slice %2 {offsets = [4, 0], sizes = [1, 512], strides = [1, 1]} : vector<9x512xf32> to vector<1x512xf32>
    %85 = vector.broadcast %84 : vector<1x512xf32> to vector<8x512xf32>
    %86 = arith.mulf %16, %85 : vector<8x512xf32>
    %c511_i32_17 = arith.constant 511 : i32
    %87 = tpu.dynamic_rotate %16 by %c511_i32_17 dim 1 : vector<8x512xf32>, i32 -> vector<8x512xf32>
    %88 = vector.extract_strided_slice %2 {offsets = [5, 0], sizes = [1, 512], strides = [1, 1]} : vector<9x512xf32> to vector<1x512xf32>
    %89 = vector.broadcast %88 : vector<1x512xf32> to vector<8x512xf32>
    %90 = arith.mulf %87, %89 : vector<8x512xf32>
    %c497_i32_18 = arith.constant 497 : i32
    %91 = tpu.dynamic_rotate %16 by %c497_i32_18 dim 1 : vector<8x512xf32>, i32 -> vector<8x512xf32>
    %92 = vector.extract_strided_slice %2 {offsets = [6, 0], sizes = [1, 512], strides = [1, 1]} : vector<9x512xf32> to vector<1x512xf32>
    %93 = vector.broadcast %92 : vector<1x512xf32> to vector<8x512xf32>
    %94 = arith.mulf %91, %93 : vector<8x512xf32>
    %c496_i32_19 = arith.constant 496 : i32
    %95 = tpu.dynamic_rotate %16 by %c496_i32_19 dim 1 : vector<8x512xf32>, i32 -> vector<8x512xf32>
    %96 = vector.extract_strided_slice %2 {offsets = [7, 0], sizes = [1, 512], strides = [1, 1]} : vector<9x512xf32> to vector<1x512xf32>
    %97 = vector.broadcast %96 : vector<1x512xf32> to vector<8x512xf32>
    %98 = arith.mulf %95, %97 : vector<8x512xf32>
    %c495_i32_20 = arith.constant 495 : i32
    %99 = tpu.dynamic_rotate %16 by %c495_i32_20 dim 1 : vector<8x512xf32>, i32 -> vector<8x512xf32>
    %100 = vector.extract_strided_slice %2 {offsets = [8, 0], sizes = [1, 512], strides = [1, 1]} : vector<9x512xf32> to vector<1x512xf32>
    %101 = vector.broadcast %100 : vector<1x512xf32> to vector<8x512xf32>
    %102 = arith.mulf %99, %101 : vector<8x512xf32>
    %103 = tpu.concatenate %71, %75, %79, %83, %86, %90, %94, %98, %102 in 0 : vector<8x512xf32>, vector<8x512xf32>, vector<8x512xf32>, vector<8x512xf32>, vector<8x512xf32>, vector<8x512xf32>, vector<8x512xf32>, vector<8x512xf32>, vector<8x512xf32> -> vector<72x512xf32>
    %104 = arith.truncf %103 : vector<72x512xf32> to vector<72x512xbf16>
    %105 = vector.extract_strided_slice %4 {offsets = [24, 0], sizes = [8, 72], strides = [1, 1]} : vector<32x72xf32> to vector<8x72xf32>
    %106 = arith.truncf %105 : vector<8x72xf32> to vector<8x72xbf16>
    %cst_21 = arith.constant dense<0.000000e+00> : vector<8x512xf32>
    %107 = tpu.matmul %106, %104, %cst_21 {dimension_numbers = #tpu.dot_dimension_numbers<[1], [0], [0], [1], [0, 0, 1, 1], [], []>} : vector<8x72xbf16>, vector<72x512xbf16>, vector<8x512xf32> -> vector<8x512xf32>
    %108 = vector.extract_strided_slice %3 {offsets = [56, 0], sizes = [8, 1], strides = [1, 1]} : vector<96x1xf32> to vector<8x1xf32>
    %109 = vector.broadcast %108 : vector<8x1xf32> to vector<8x512xf32>
    %110 = arith.mulf %107, %109 : vector<8x512xf32>
    %111 = vector.extract_strided_slice %3 {offsets = [88, 0], sizes = [8, 1], strides = [1, 1]} : vector<96x1xf32> to vector<8x1xf32>
    %112 = vector.broadcast %111 : vector<8x1xf32> to vector<8x512xf32>
    %113 = arith.addf %110, %112 : vector<8x512xf32>
    %cst_22 = arith.constant 0.000000e+00 : f32
    %114 = vector.broadcast %cst_22 : f32 to vector<8x512xf32>
    %115 = arith.maximumf %113, %114 : vector<8x512xf32>
    %116 = arith.addf %65, %115 : vector<8x512xf32>
    %117 = arith.addf %66, %16 : vector<8x512xf32>
    %118 = arith.addf %67, %16 : vector<8x512xf32>
    %c0_23 = arith.constant 0 : index
    %c0_24 = arith.constant 0 : index
    %c0_25 = arith.constant 0 : index
    %119 = vector.load %arg6[%c0_23, %c0_24, %c0_25] : memref<1x24x512xf32, #tpu.memory_space<vmem>>, vector<1x8x512xf32>
    %120 = vector.shape_cast %119 : vector<1x8x512xf32> to vector<8x512xf32>
    %121 = vector.shape_cast %116 : vector<8x512xf32> to vector<1x8x512xf32>
    tpu.vector_store %arg6[%c0_23, %c0_24, %c0_25], %121 {strides = array<i32>} : memref<1x24x512xf32, #tpu.memory_space<vmem>>, vector<1x8x512xf32>,
    %c0_26 = arith.constant 0 : index
    %c8 = arith.constant 8 : index
    %c0_27 = arith.constant 0 : index
    %122 = vector.load %arg6[%c0_26, %c8, %c0_27] : memref<1x24x512xf32, #tpu.memory_space<vmem>>, vector<1x8x512xf32>
    %123 = vector.shape_cast %122 : vector<1x8x512xf32> to vector<8x512xf32>
    %124 = vector.shape_cast %117 : vector<8x512xf32> to vector<1x8x512xf32>
    tpu.vector_store %arg6[%c0_26, %c8, %c0_27], %124 {strides = array<i32>} : memref<1x24x512xf32, #tpu.memory_space<vmem>>, vector<1x8x512xf32>,
    %c0_28 = arith.constant 0 : index
    %c16 = arith.constant 16 : index
    %c0_29 = arith.constant 0 : index
    %125 = vector.load %arg6[%c0_28, %c16, %c0_29] : memref<1x24x512xf32, #tpu.memory_space<vmem>>, vector<1x8x512xf32>
    %126 = vector.shape_cast %125 : vector<1x8x512xf32> to vector<8x512xf32>
    %127 = vector.shape_cast %118 : vector<8x512xf32> to vector<1x8x512xf32>
    tpu.vector_store %arg6[%c0_28, %c16, %c0_29], %127 {strides = array<i32>} : memref<1x24x512xf32, #tpu.memory_space<vmem>>, vector<1x8x512xf32>,
    return
  }
  func.func @transform_0(%arg0: i32) -> (i32, i32, i32) {
    %c0_i32 = arith.constant 0 : i32
    %c0_i32_0 = arith.constant 0 : i32
    %c0_i32_1 = arith.constant 0 : i32
    return %arg0, %c0_i32, %c0_i32_0 : i32, i32, i32
  }
  func.func @transform_1(%arg0: i32) -> (i32, i32) {
    %c0_i32 = arith.constant 0 : i32
    %c0_i32_0 = arith.constant 0 : i32
    %c0_i32_1 = arith.constant 0 : i32
    return %c0_i32, %c0_i32_0 : i32, i32
  }
  func.func @transform_2(%arg0: i32) -> (i32, i32) {
    %c0_i32 = arith.constant 0 : i32
    %c0_i32_0 = arith.constant 0 : i32
    %c0_i32_1 = arith.constant 0 : i32
    return %c0_i32, %c0_i32_0 : i32, i32
  }
  func.func @transform_3(%arg0: i32) -> (i32, i32) {
    %c0_i32 = arith.constant 0 : i32
    %c0_i32_0 = arith.constant 0 : i32
    %c0_i32_1 = arith.constant 0 : i32
    return %c0_i32, %c0_i32_0 : i32, i32
  }
  func.func @transform_4(%arg0: i32) -> (i32, i32) {
    %c0_i32 = arith.constant 0 : i32
    %c0_i32_0 = arith.constant 0 : i32
    %c0_i32_1 = arith.constant 0 : i32
    return %c0_i32, %c0_i32_0 : i32, i32
  }
  func.func @transform_5(%arg0: i32) -> (i32, i32, i32) {
    %c0_i32 = arith.constant 0 : i32
    %c0_i32_0 = arith.constant 0 : i32
    %c0_i32_1 = arith.constant 0 : i32
    return %arg0, %c0_i32, %c0_i32_0 : i32, i32, i32
  }
}

</mosaic_0001>

<llo_original>
// kernel: _lambda_.1
$region0: #{_lambda_.1}
  #allocation0 [shape = 'u32[]', space=smem, size = 0x4, offset = 0x4, fixed_abs, tag = 'smem constant byte address 0x4 - core index']
  #allocation1 [shape = 'u32[144,128]{1,0:T(1,128)}', space=vmem, size = 0x12000, scoped, tag = 'internal scratch']
  %s0 = inlined_call_operand.vmem [shape: f32[1,16,512], index: 0, kind: input, shape index: {}]
  %s1 = inlined_call_operand.vmem [shape: f32[9,512], index: 1, kind: input, shape index: {}]
  %s2 = inlined_call_operand.vmem [shape: f32[16,16], index: 2, kind: input, shape index: {}]
  %s3 = inlined_call_operand.vmem [shape: f32[32,72], index: 3, kind: input, shape index: {}]
  %s4 = inlined_call_operand.vmem [shape: f32[96,1], index: 4, kind: input, shape index: {}]
  %s5 = inlined_call_operand.vmem [shape: f32[1,24,512], index: 5, kind: output, shape index: {}]
  %s6 = sld [smem:[#allocation0]]
  $region30: #{_lambda_.1} parent=0
    _
  %s8 = ssub.s32 1, %s6
  %s9 = scalar_select 0, %s8, %s6
  // Predicated region
  $region2: #{_lambda_.1} parent=0 // pred_check
    _
  $region3: #{_lambda_.1} parent=0 // pred_check_branch
    %11 = sbr.rel (0) target = $region5
  $region4: #{_lambda_.1} parent=0 // pred_region
    _
  $region5: #{_lambda_.1} parent=0 // pred_fallthru
    _
  // Predicated region
  $region6: #{_lambda_.1} parent=0 // pred_check
    _
  $region7: #{_lambda_.1} parent=0 // pred_check_branch
    %13 = sbr.rel (0) target = $region9
  $region8: #{_lambda_.1} parent=0 // pred_region
    _
  $region9: #{_lambda_.1} parent=0 // pred_fallthru
    _
  // Predicated region
  $region10: #{_lambda_.1} parent=0 // pred_check
    _
  $region11: #{_lambda_.1} parent=0 // pred_check_branch
    %15 = sbr.rel (0) target = $region13
  $region12: #{_lambda_.1} parent=0 // pred_region
    _
  $region13: #{_lambda_.1} parent=0 // pred_fallthru
    _
  // Predicated region
  $region14: #{_lambda_.1} parent=0 // pred_check
    _
  $region15: #{_lambda_.1} parent=0 // pred_check_branch
    %17 = sbr.rel (0) target = $region17
  $region16: #{_lambda_.1} parent=0 // pred_region
    _
  $region17: #{_lambda_.1} parent=0 // pred_fallthru
    _
  // Predicated region
  $region18: #{_lambda_.1} parent=0 // pred_check
    _
  $region19: #{_lambda_.1} parent=0 // pred_check_branch
    %19 = sbr.rel (0) target = $region21
  $region20: #{_lambda_.1} parent=0 // pred_region
    _
  $region21: #{_lambda_.1} parent=0 // pred_fallthru
    _
  %v21 = vld [vmem:[%s0] sm:$0xff]
  %v22 = vld [vmem:[%s0 + $0x8] sm:$0xff]
  %v23 = vld [vmem:[%s0 + $0x10] sm:$0xff]
  %v24 = vld [vmem:[%s0 + $0x18] sm:$0xff]
  %v25 = vld [vmem:[%s0 + $0x20] sm:$0xff]
  %v26 = vld [vmem:[%s0 + $0x28] sm:$0xff]
  %v27 = vld [vmem:[%s0 + $0x30] sm:$0xff]
  %v28 = vld [vmem:[%s0 + $0x38] sm:$0xff]
  %v29 = vld [vmem:[%s1] sm:$0xff]
  %v30 = vld [vmem:[%s1 + $0x8] sm:$0xff]
  %v31 = vld [vmem:[%s1 + $0x10] sm:$0xff]
  %v32 = vld [vmem:[%s1 + $0x18] sm:$0xff]
  %v33 = vld [vmem:[%s1 + $0x20] sm:$0x1]
  %v34 = vld [vmem:[%s1 + $0x28] sm:$0x1]
  %v35 = vld [vmem:[%s1 + $0x30] sm:$0x1]
  %v36 = vld [vmem:[%s1 + $0x38] sm:$0x1]
  %v37 = vld [vmem:[%s4] sm:$0xff]
  %v38 = vld [vmem:[%s4 + $0x8] sm:$0xff]
  %v39 = vld [vmem:[%s4 + $0x10] sm:$0xff]
  %v40 = vld [vmem:[%s4 + $0x18] sm:$0xff]
  %v41 = vld [vmem:[%s4 + $0x20] sm:$0xff]
  %v42 = vld [vmem:[%s4 + $0x28] sm:$0xff]
  %v43 = vld [vmem:[%s4 + $0x30] sm:$0xff]
  %v44 = vld [vmem:[%s4 + $0x38] sm:$0xff]
  %v45 = vld [vmem:[%s4 + $0x40] sm:$0xff]
  %v46 = vld [vmem:[%s4 + $0x48] sm:$0xff]
  %v47 = vld [vmem:[%s4 + $0x50] sm:$0xff]
  %v48 = vld [vmem:[%s4 + $0x58] sm:$0xff]
  %v49 = vld [vmem:[%s3] sm:$0xff]
  %v50 = vld [vmem:[%s3 + $0x8] sm:$0xff]
  %v51 = vld [vmem:[%s3 + $0x10] sm:$0xff]
  %v52 = vld [vmem:[%s3 + $0x18] sm:$0xff]
  %v53 = vld [vmem:[%s2] sm:$0xff]
  %v54 = vld [vmem:[%s2 + $0x8] sm:$0xff]
  %vm55 = vcmask 130048
  %v57 = vsel %vm55, %v53, 0
  %v60 = vsel %vm55, %v54, 0
  %62 = vmatprep.subr.mxu0 %v22
  %63 = vmatpush1.msra.mxu0 %v21
  %64 = vmatprep.subr.mxu0 %v26
  %65 = vmatpush1.msra.mxu0 %v25
  %66 = vmatprep.subr.mxu0 0.0
  %67 = vmatpush1.msra.mxu0 0.0
  %68 = vmatprep.subr.mxu0 0.0
  %69 = vmatpush1.msra.mxu0 0.0
  %70 = vmatprep.subr.mxu0 0.0
  %71 = vmatpush1.msra.mxu0 0.0
  %72 = vmatprep.subr.mxu0 0.0
  %73 = vmatpush1.msra.mxu0 0.0
  %74 = vmatprep.subr.mxu0 0.0
  %75 = vmatpush1.msra.mxu0 0.0
  %76 = vmatprep.subr.mxu0 0.0
  %77 = vmatpush1.msra.mxu0 0.0
  %78 = vmatprep.subr.mxu0 0.0
  %79 = vmatpush1.msra.mxu0 0.0
  %80 = vmatprep.subr.mxu0 0.0
  %81 = vmatpush1.msra.mxu0 0.0
  %82 = vmatprep.subr.mxu0 0.0
  %83 = vmatpush1.msra.mxu0 0.0
  %84 = vmatprep.subr.mxu0 0.0
  %85 = vmatpush1.msra.mxu0 0.0
  %86 = vmatprep.subr.mxu0 0.0
  %87 = vmatpush1.msra.mxu0 0.0
  %88 = vmatprep.subr.mxu0 0.0
  %89 = vmatpush1.msra.mxu0 0.0
  %90 = vmatprep.subr.mxu0 0.0
  %91 = vmatpush1.msra.mxu0 0.0
  %92 = vmatprep.subr.mxu0 0.0
  %93 = vmatpush1.msra.mxu0 0.0
  %94 = vmatprep.subr.mxu0 0.0
  %95 = vmatpush1.msra.mxu0 0.0
  %96 = vmatprep.subr.mxu0 0.0
  %97 = vmatpush1.msra.mxu0 0.0
  %98 = vmatprep.subr.mxu0 0.0
  %99 = vmatpush1.msra.mxu0 0.0
  %100 = vmatprep.subr.mxu0 0.0
  %101 = vmatpush1.msra.mxu0 0.0
  %102 = vmatprep.subr.mxu0 0.0
  %103 = vmatpush1.msra.mxu0 0.0
  %104 = vmatprep.subr.mxu0 0.0
  %105 = vmatpush1.msra.mxu0 0.0
  %106 = vmatprep.subr.mxu0 0.0
  %107 = vmatpush1.msra.mxu0 0.0
  %108 = vmatprep.subr.mxu0 0.0
  %109 = vmatpush1.msra.mxu0 0.0
  %110 = vmatprep.subr.mxu0 0.0
  %111 = vmatpush1.msra.mxu0 0.0
  %112 = vmatprep.subr.mxu0 0.0
  %113 = vmatpush1.msra.mxu0 0.0
  %114 = vmatprep.subr.mxu0 0.0
  %115 = vmatpush1.msra.mxu0 0.0
  %116 = vmatprep.subr.mxu0 0.0
  %117 = vmatpush1.msra.mxu0 0.0
  %118 = vmatprep.subr.mxu0 0.0
  %119 = vmatpush1.msra.mxu0 0.0
  %120 = vmatprep.subr.mxu0 0.0
  %121 = vmatpush1.msra.mxu0 0.0
  %122 = vmatprep.subr.mxu0 0.0
  %123 = vmatpush1.msra.mxu0 0.0
  %124 = vmatprep.subr.mxu0 0.0
  %125 = vmatpush1.msra.mxu0 0.0
  %126 = vmatprep.mubr.f32.mxu0 0.0
  %127 = vmatmul.mubr.f32.gmra.mrb[0].mxu0 %v57
  %v128 = vpop.f32.mrb[0].mxu0
  %v129 = vadd.f32 0.0, %v128
  %v130 = vpop.f32.mrb[0].mxu0
  %v131 = vadd.f32 0.0, %v130
  %132 = vmatprep.mubr.f32.mxu0 0.0
  %133 = vmatmul.mubr.f32.gmra.mrb[0].mxu0 %v60
  %v134 = vpop.f32.mrb[0].mxu0
  %v135 = vadd.f32 0.0, %v134
  %v136 = vpop.f32.mrb[0].mxu0
  %v137 = vadd.f32 0.0, %v136
  %138 = vdwg.mxu0
  %139 = vmatprep.subr.mxu0 %v24
  %140 = vmatpush1.msra.mxu0 %v23
  %141 = vmatprep.subr.mxu0 %v28
  %142 = vmatpush1.msra.mxu0 %v27
  %143 = vmatprep.subr.mxu0 0.0
  %144 = vmatpush1.msra.mxu0 0.0
  %145 = vmatprep.subr.mxu0 0.0
  %146 = vmatpush1.msra.mxu0 0.0
  %147 = vmatprep.subr.mxu0 0.0
  %148 = vmatpush1.msra.mxu0 0.0
  %149 = vmatprep.subr.mxu0 0.0
  %150 = vmatpush1.msra.mxu0 0.0
  %151 = vmatprep.subr.mxu0 0.0
  %152 = vmatpush1.msra.mxu0 0.0
  %153 = vmatprep.subr.mxu0 0.0
  %154 = vmatpush1.msra.mxu0 0.0
  %155 = vmatprep.subr.mxu0 0.0
  %156 = vmatpush1.msra.mxu0 0.0
  %157 = vmatprep.subr.mxu0 0.0
  %158 = vmatpush1.msra.mxu0 0.0
  %159 = vmatprep.subr.mxu0 0.0
  %160 = vmatpush1.msra.mxu0 0.0
  %161 = vmatprep.subr.mxu0 0.0
  %162 = vmatpush1.msra.mxu0 0.0
  %163 = vmatprep.subr.mxu0 0.0
  %164 = vmatpush1.msra.mxu0 0.0
  %165 = vmatprep.subr.mxu0 0.0
  %166 = vmatpush1.msra.mxu0 0.0
  %167 = vmatprep.subr.mxu0 0.0
  %168 = vmatpush1.msra.mxu0 0.0
  %169 = vmatprep.subr.mxu0 0.0
  %170 = vmatpush1.msra.mxu0 0.0
  %171 = vmatprep.subr.mxu0 0.0
  %172 = vmatpush1.msra.mxu0 0.0
  %173 = vmatprep.subr.mxu0 0.0
  %174 = vmatpush1.msra.mxu0 0.0
  %175 = vmatprep.subr.mxu0 0.0
  %176 = vmatpush1.msra.mxu0 0.0
  %177 = vmatprep.subr.mxu0 0.0
  %178 = vmatpush1.msra.mxu0 0.0
  %179 = vmatprep.subr.mxu0 0.0
  %180 = vmatpush1.msra.mxu0 0.0
  %181 = vmatprep.subr.mxu0 0.0
  %182 = vmatpush1.msra.mxu0 0.0
  %183 = vmatprep.subr.mxu0 0.0
  %184 = vmatpush1.msra.mxu0 0.0
  %185 = vmatprep.subr.mxu0 0.0
  %186 = vmatpush1.msra.mxu0 0.0
  %187 = vmatprep.subr.mxu0 0.0
  %188 = vmatpush1.msra.mxu0 0.0
  %189 = vmatprep.subr.mxu0 0.0
  %190 = vmatpush1.msra.mxu0 0.0
  %191 = vmatprep.subr.mxu0 0.0
  %192 = vmatpush1.msra.mxu0 0.0
  %193 = vmatprep.subr.mxu0 0.0
  %194 = vmatpush1.msra.mxu0 0.0
  %195 = vmatprep.subr.mxu0 0.0
  %196 = vmatpush1.msra.mxu0 0.0
  %197 = vmatprep.subr.mxu0 0.0
  %198 = vmatpush1.msra.mxu0 0.0
  %199 = vmatprep.subr.mxu0 0.0
  %200 = vmatpush1.msra.mxu0 0.0
  %201 = vmatprep.subr.mxu0 0.0
  %202 = vmatpush1.msra.mxu0 0.0
  %203 = vmatprep.mubr.f32.mxu0 0.0
  %204 = vmatmul.mubr.f32.gmra.mrb[0].mxu0 %v57
  %v205 = vpop.f32.mrb[0].mxu0
  %v206 = vadd.f32 0.0, %v205
  %v207 = vpop.f32.mrb[0].mxu0
  %v208 = vadd.f32 0.0, %v207
  %209 = vmatprep.mubr.f32.mxu0 0.0
  %210 = vmatmul.mubr.f32.gmra.mrb[0].mxu0 %v60
  %v211 = vpop.f32.mrb[0].mxu0
  %v212 = vadd.f32 0.0, %v211
  %v213 = vpop.f32.mrb[0].mxu0
  %v214 = vadd.f32 0.0, %v213
  %215 = vdwg.mxu0
  %217 = vset.pattern.permute.xlu0 0
  %218 = vperm.xlu0 %217, %v37
  %v219 = vpop.permute.xlu0 %218
  %222 = vset.pattern.permute.xlu0 0
  %223 = vperm.xlu0 %222, %v38
  %v224 = vpop.permute.xlu0 %223
  %v226 = vmul.f32 %v129, %v219
  %v227 = vmul.f32 %v131, %v219
  %v228 = vmul.f32 %v206, %v219
  %v229 = vmul.f32 %v208, %v219
  %v230 = vmul.f32 %v135, %v224
  %v231 = vmul.f32 %v137, %v224
  %v232 = vmul.f32 %v212, %v224
  %v233 = vmul.f32 %v214, %v224
  %235 = vset.pattern.permute.xlu0 0
  %236 = vperm.xlu0 %235, %v39
  %v237 = vpop.permute.xlu0 %236
  %240 = vset.pattern.permute.xlu0 0
  %241 = vperm.xlu0 %240, %v40
  %v242 = vpop.permute.xlu0 %241
  %v244 = vadd.f32 %v226, %v237
  %v245 = vadd.f32 %v227, %v237
  %v246 = vadd.f32 %v228, %v237
  %v247 = vadd.f32 %v229, %v237
  %v248 = vadd.f32 %v230, %v242
  %v249 = vadd.f32 %v231, %v242
  %v250 = vadd.f32 %v232, %v242
  %v251 = vadd.f32 %v233, %v242
  %v252 = vmax.f32 %v244, 0.0
  %v253 = vmax.f32 %v245, 0.0
  %v254 = vmax.f32 %v246, 0.0
  %v255 = vmax.f32 %v247, 0.0
  %v256 = vmax.f32 %v248, 0.0
  %v257 = vmax.f32 %v249, 0.0
  %v258 = vmax.f32 %v250, 0.0
  %v259 = vmax.f32 %v251, 0.0
  %260 = vrot.lane.b32.xlu0 %v252, 17
  %v261 = vpop.permute.xlu0 %260
  %262 = vrot.lane.b32.xlu0 %v253, 17
  %v263 = vpop.permute.xlu0 %262
  %264 = vrot.lane.b32.xlu0 %v254, 17
  %v265 = vpop.permute.xlu0 %264
  %266 = vrot.lane.b32.xlu0 %v255, 17
  %v267 = vpop.permute.xlu0 %266
  %v268 = vlaneseq
  %v269 = vand.u32 %v268, 127
  %vm270 = vcmp.lt.s32.totalorder %v269, 17
  %v271 = vsel %vm270, %v265, %v267
  %v272 = vsel %vm270, %v263, %v265
  %v273 = vsel %vm270, %v261, %v263
  %v274 = vsel %vm270, %v267, %v261
  %v275 = vlaneseq
  %v276 = vshrl.u32 %v275, 7
  %v277 = vsub.s32 0, %v276
  %v278 = vrot.slane %v29, %v277
  %v279 = vlaneseq
  %v280 = vshrl.u32 %v279, 7
  %v281 = vsub.s32 0, %v280
  %v282 = vrot.slane %v30, %v281
  %v283 = vlaneseq
  %v284 = vshrl.u32 %v283, 7
  %v285 = vsub.s32 0, %v284
  %v286 = vrot.slane %v31, %v285
  %v287 = vlaneseq
  %v288 = vshrl.u32 %v287, 7
  %v289 = vsub.s32 0, %v288
  %v290 = vrot.slane %v32, %v289
  %v291 = vmul.f32 %v274, %v278
  %v292 = vmul.f32 %v273, %v282
  %v293 = vmul.f32 %v272, %v286
  %v294 = vmul.f32 %v271, %v290
  %295 = vrot.lane.b32.xlu0 %v252, 16
  %v296 = vpop.permute.xlu0 %295
  %297 = vrot.lane.b32.xlu0 %v253, 16
  %v298 = vpop.permute.xlu0 %297
  %299 = vrot.lane.b32.xlu0 %v254, 16
  %v300 = vpop.permute.xlu0 %299
  %301 = vrot.lane.b32.xlu0 %v255, 16
  %v302 = vpop.permute.xlu0 %301
  %vm303 = vcmp.lt.s32.totalorder %v269, 16
  %v304 = vsel %vm303, %v300, %v302
  %v305 = vsel %vm303, %v298, %v300
  %v306 = vsel %vm303, %v296, %v298
  %v307 = vsel %vm303, %v302, %v296
  %v308 = vlaneseq
  %v309 = vshrl.u32 %v308, 7
  %v310 = vsub.s32 1, %v309
  %v311 = vrot.slane %v29, %v310
  %v312 = vlaneseq
  %v313 = vshrl.u32 %v312, 7
  %v314 = vsub.s32 1, %v313
  %v315 = vrot.slane %v30, %v314
  %v316 = vlaneseq
  %v317 = vshrl.u32 %v316, 7
  %v318 = vsub.s32 1, %v317
  %v319 = vrot.slane %v31, %v318
  %v320 = vlaneseq
  %v321 = vshrl.u32 %v320, 7
  %v322 = vsub.s32 1, %v321
  %v323 = vrot.slane %v32, %v322
  %v324 = vmul.f32 %v307, %v311
  %v325 = vmul.f32 %v306, %v315
  %v326 = vmul.f32 %v305, %v319
  %v327 = vmul.f32 %v304, %v323
  %328 = vrot.lane.b32.xlu0 %v252, 15
  %v329 = vpop.permute.xlu0 %328
  %330 = vrot.lane.b32.xlu0 %v253, 15
  %v331 = vpop.permute.xlu0 %330
  %332 = vrot.lane.b32.xlu0 %v254, 15
  %v333 = vpop.permute.xlu0 %332
  %334 = vrot.lane.b32.xlu0 %v255, 15
  %v335 = vpop.permute.xlu0 %334
  %vm336 = vcmp.lt.s32.totalorder %v269, 15
  %v337 = vsel %vm336, %v333, %v335
  %v338 = vsel %vm336, %v331, %v333
  %v339 = vsel %vm336, %v329, %v331
  %v340 = vsel %vm336, %v335, %v329
  %v341 = vlaneseq
  %v342 = vshrl.u32 %v341, 7
  %v343 = vsub.s32 2, %v342
  %v344 = vrot.slane %v29, %v343
  %v345 = vlaneseq
  %v346 = vshrl.u32 %v345, 7
  %v347 = vsub.s32 2, %v346
  %v348 = vrot.slane %v30, %v347
  %v349 = vlaneseq
  %v350 = vshrl.u32 %v349, 7
  %v351 = vsub.s32 2, %v350
  %v352 = vrot.slane %v31, %v351
  %v353 = vlaneseq
  %v354 = vshrl.u32 %v353, 7
  %v355 = vsub.s32 2, %v354
  %v356 = vrot.slane %v32, %v355
  %v357 = vmul.f32 %v340, %v344
  %v358 = vmul.f32 %v339, %v348
  %v359 = vmul.f32 %v338, %v352
  %v360 = vmul.f32 %v337, %v356
  %361 = vrot.lane.b32.xlu0 %v252, 1
  %v362 = vpop.permute.xlu0 %361
  %363 = vrot.lane.b32.xlu0 %v253, 1
  %v364 = vpop.permute.xlu0 %363
  %365 = vrot.lane.b32.xlu0 %v254, 1
  %v366 = vpop.permute.xlu0 %365
  %367 = vrot.lane.b32.xlu0 %v255, 1
  %v368 = vpop.permute.xlu0 %367
  %vm369 = vcmp.lt.s32.totalorder %v269, 1
  %v370 = vsel %vm369, %v366, %v368
  %v371 = vsel %vm369, %v364, %v366
  %v372 = vsel %vm369, %v362, %v364
  %v373 = vsel %vm369, %v368, %v362
  %v374 = vlaneseq
  %v375 = vshrl.u32 %v374, 7
  %v376 = vsub.s32 3, %v375
  %v377 = vrot.slane %v29, %v376
  %v378 = vlaneseq
  %v379 = vshrl.u32 %v378, 7
  %v380 = vsub.s32 3, %v379
  %v381 = vrot.slane %v30, %v380
  %v382 = vlaneseq
  %v383 = vshrl.u32 %v382, 7
  %v384 = vsub.s32 3, %v383
  %v385 = vrot.slane %v31, %v384
  %v386 = vlaneseq
  %v387 = vshrl.u32 %v386, 7
  %v388 = vsub.s32 3, %v387
  %v389 = vrot.slane %v32, %v388
  %v390 = vmul.f32 %v373, %v377
  %v391 = vmul.f32 %v372, %v381
  %v392 = vmul.f32 %v371, %v385
  %v393 = vmul.f32 %v370, %v389
  %v394 = vlaneseq
  %v395 = vshrl.u32 %v394, 7
  %v396 = vsub.s32 4, %v395
  %v397 = vrot.slane %v29, %v396
  %v398 = vlaneseq
  %v399 = vshrl.u32 %v398, 7
  %v400 = vsub.s32 4, %v399
  %v401 = vrot.slane %v30, %v400
  %v402 = vlaneseq
  %v403 = vshrl.u32 %v402, 7
  %v404 = vsub.s32 4, %v403
  %v405 = vrot.slane %v31, %v404
  %v406 = vlaneseq
  %v407 = vshrl.u32 %v406, 7
  %v408 = vsub.s32 4, %v407
  %v409 = vrot.slane %v32, %v408
  %v410 = vmul.f32 %v252, %v397
  %v411 = vmul.f32 %v253, %v401
  %v412 = vmul.f32 %v254, %v405
  %v413 = vmul.f32 %v255, %v409
  %414 = vrot.lane.b32.xlu0 %v252, 127
  %v415 = vpop.permute.xlu0 %414
  %416 = vrot.lane.b32.xlu0 %v253, 127
  %v417 = vpop.permute.xlu0 %416
  %418 = vrot.lane.b32.xlu0 %v254, 127
  %v419 = vpop.permute.xlu0 %418
  %420 = vrot.lane.b32.xlu0 %v255, 127
  %v421 = vpop.permute.xlu0 %420
  %vm422 = vcmp.lt.s32.totalorder %v269, 127
  %v423 = vsel %vm422, %v419, %v421
  %v424 = vsel %vm422, %v417, %v419
  %v425 = vsel %vm422, %v415, %v417
  %v426 = vsel %vm422, %v421, %v415
  %v427 = vlaneseq
  %v428 = vshrl.u32 %v427, 7
  %v429 = vsub.s32 5, %v428
  %v430 = vrot.slane %v29, %v429
  %v431 = vlaneseq
  %v432 = vshrl.u32 %v431, 7
  %v433 = vsub.s32 5, %v432
  %v434 = vrot.slane %v30, %v433
  %v435 = vlaneseq
  %v436 = vshrl.u32 %v435, 7
  %v437 = vsub.s32 5, %v436
  %v438 = vrot.slane %v31, %v437
  %v439 = vlaneseq
  %v440 = vshrl.u32 %v439, 7
  %v441 = vsub.s32 5, %v440
  %v442 = vrot.slane %v32, %v441
  %v443 = vmul.f32 %v425, %v430
  %v444 = vmul.f32 %v424, %v434
  %v445 = vmul.f32 %v423, %v438
  %v446 = vmul.f32 %v426, %v442
  %447 = vrot.lane.b32.xlu0 %v252, 113
  %v448 = vpop.permute.xlu0 %447
  %449 = vrot.lane.b32.xlu0 %v253, 113
  %v450 = vpop.permute.xlu0 %449
  %451 = vrot.lane.b32.xlu0 %v254, 113
  %v452 = vpop.permute.xlu0 %451
  %453 = vrot.lane.b32.xlu0 %v255, 113
  %v454 = vpop.permute.xlu0 %453
  %vm455 = vcmp.lt.s32.totalorder %v269, 113
  %v456 = vsel %vm455, %v452, %v454
  %v457 = vsel %vm455, %v450, %v452
  %v458 = vsel %vm455, %v448, %v450
  %v459 = vsel %vm455, %v454, %v448
  %v460 = vlaneseq
  %v461 = vshrl.u32 %v460, 7
  %v462 = vsub.s32 6, %v461
  %v463 = vrot.slane %v29, %v462
  %v464 = vlaneseq
  %v465 = vshrl.u32 %v464, 7
  %v466 = vsub.s32 6, %v465
  %v467 = vrot.slane %v30, %v466
  %v468 = vlaneseq
  %v469 = vshrl.u32 %v468, 7
  %v470 = vsub.s32 6, %v469
  %v471 = vrot.slane %v31, %v470
  %v472 = vlaneseq
  %v473 = vshrl.u32 %v472, 7
  %v474 = vsub.s32 6, %v473
  %v475 = vrot.slane %v32, %v474
  %v476 = vmul.f32 %v458, %v463
  %v477 = vmul.f32 %v457, %v467
  %v478 = vmul.f32 %v456, %v471
  %v479 = vmul.f32 %v459, %v475
  %480 = vrot.lane.b32.xlu0 %v252, 112
  %v481 = vpop.permute.xlu0 %480
  %482 = vrot.lane.b32.xlu0 %v253, 112
  %v483 = vpop.permute.xlu0 %482
  %484 = vrot.lane.b32.xlu0 %v254, 112
  %v485 = vpop.permute.xlu0 %484
  %486 = vrot.lane.b32.xlu0 %v255, 112
  %v487 = vpop.permute.xlu0 %486
  %vm488 = vcmp.lt.s32.totalorder %v269, 112
  %v489 = vsel %vm488, %v485, %v487
  %v490 = vsel %vm488, %v483, %v485
  %v491 = vsel %vm488, %v481, %v483
  %v492 = vsel %vm488, %v487, %v481
  %v493 = vlaneseq
  %v494 = vshrl.u32 %v493, 7
  %v495 = vsub.s32 7, %v494
  %v496 = vrot.slane %v29, %v495
  %v497 = vlaneseq
  %v498 = vshrl.u32 %v497, 7
  %v499 = vsub.s32 7, %v498
  %v500 = vrot.slane %v30, %v499
  %v501 = vlaneseq
  %v502 = vshrl.u32 %v501, 7
  %v503 = vsub.s32 7, %v502
  %v504 = vrot.slane %v31, %v503
  %v505 = vlaneseq
  %v506 = vshrl.u32 %v505, 7
  %v507 = vsub.s32 7, %v506
  %v508 = vrot.slane %v32, %v507
  %v509 = vmul.f32 %v491, %v496
  %v510 = vmul.f32 %v490, %v500
  %v511 = vmul.f32 %v489, %v504
  %v512 = vmul.f32 %v492, %v508
  %513 = vrot.lane.b32.xlu0 %v252, 111
  %v514 = vpop.permute.xlu0 %513
  %515 = vrot.lane.b32.xlu0 %v253, 111
  %v516 = vpop.permute.xlu0 %515
  %517 = vrot.lane.b32.xlu0 %v254, 111
  %v518 = vpop.permute.xlu0 %517
  %519 = vrot.lane.b32.xlu0 %v255, 111
  %v520 = vpop.permute.xlu0 %519
  %vm521 = vcmp.lt.s32.totalorder %v269, 111
  %v522 = vsel %vm521, %v518, %v520
  %v523 = vsel %vm521, %v516, %v518
  %v524 = vsel %vm521, %v514, %v516
  %v525 = vsel %vm521, %v520, %v514
  %v526 = vlaneseq
  %v527 = vshrl.u32 %v526, 7
  %v528 = vsub.s32 0, %v527
  %v529 = vrot.slane %v33, %v528
  %v530 = vlaneseq
  %v531 = vshrl.u32 %v530, 7
  %v532 = vsub.s32 0, %v531
  %v533 = vrot.slane %v34, %v532
  %v534 = vlaneseq
  %v535 = vshrl.u32 %v534, 7
  %v536 = vsub.s32 0, %v535
  %v537 = vrot.slane %v35, %v536
  %v538 = vlaneseq
  %v539 = vshrl.u32 %v538, 7
  %v540 = vsub.s32 0, %v539
  %v541 = vrot.slane %v36, %v540
  %v542 = vmul.f32 %v524, %v529
  %v543 = vmul.f32 %v523, %v533
  %v544 = vmul.f32 %v522, %v537
  %v545 = vmul.f32 %v525, %v541
  %v546 = vpack.c.bf16 %v324, %v291
  %v547 = vpack.c.bf16 %v325, %v292
  %v548 = vpack.c.bf16 %v326, %v293
  %v549 = vpack.c.bf16 %v327, %v294
  %v550 = vpack.c.bf16 %v390, %v357
  %v551 = vpack.c.bf16 %v391, %v358
  %v552 = vpack.c.bf16 %v392, %v359
  %v553 = vpack.c.bf16 %v393, %v360
  %v554 = vpack.c.bf16 %v443, %v410
  %v555 = vpack.c.bf16 %v444, %v411
  %v556 = vpack.c.bf16 %v445, %v412
  %v557 = vpack.c.bf16 %v446, %v413
  %v558 = vpack.c.bf16 %v509, %v476
  %v559 = vpack.c.bf16 %v510, %v477
  %v560 = vpack.c.bf16 %v511, %v478
  %v561 = vpack.c.bf16 %v512, %v479
  %v562 = vpack.c.bf16 %v542, %v542
  %v563 = vpack.c.bf16 %v543, %v543
  %v564 = vpack.c.bf16 %v544, %v544
  %v565 = vpack.c.bf16 %v545, %v545
  %v566 = vpack.c.bf16 %v50, %v49
  %v567 = vpack.c.bf16 %v51, %v51
  %vm568 = vcmask 588800
  %v570 = vsel %vm568, %v566, 0
  %v573 = vsel %vm568, %v567, 0
  %vm575 = vcmask 1043456
  %v577 = vsel %vm575, %v562, 0
  %v580 = vsel %vm575, %v563, 0
  %v583 = vsel %vm575, %v564, 0
  %v586 = vsel %vm575, %v565, 0
  %588 = vmatprep.subr.bf16.mxu0 %v547
  %589 = vmatpush1.bf16.msra.mxu0 %v546
  %590 = vmatprep.subr.bf16.mxu0 %v551
  %591 = vmatpush1.bf16.msra.mxu0 %v550
  %592 = vmatprep.subr.bf16.mxu0 %v555
  %593 = vmatpush1.bf16.msra.mxu0 %v554
  %594 = vmatprep.subr.bf16.mxu0 %v559
  %595 = vmatpush1.bf16.msra.mxu0 %v558
  %596 = vmatprep.subr.bf16.mxu0 %v580
  %597 = vmatpush1.bf16.msra.mxu0 %v577
  %598 = vmatprep.subr.bf16.mxu0 0
  %599 = vmatpush1.bf16.msra.mxu0 0
  %600 = vmatprep.subr.bf16.mxu0 0
  %601 = vmatpush1.bf16.msra.mxu0 0
  %602 = vmatprep.subr.bf16.mxu0 0
  %603 = vmatpush1.bf16.msra.mxu0 0
  %604 = vmatprep.subr.bf16.mxu0 0
  %605 = vmatpush1.bf16.msra.mxu0 0
  %606 = vmatprep.subr.bf16.mxu0 0
  %607 = vmatpush1.bf16.msra.mxu0 0
  %608 = vmatprep.subr.bf16.mxu0 0
  %609 = vmatpush1.bf16.msra.mxu0 0
  %610 = vmatprep.subr.bf16.mxu0 0
  %611 = vmatpush1.bf16.msra.mxu0 0
  %612 = vmatprep.subr.bf16.mxu0 0
  %613 = vmatpush1.bf16.msra.mxu0 0
  %614 = vmatprep.subr.bf16.mxu0 0
  %615 = vmatpush1.bf16.msra.mxu0 0
  %616 = vmatprep.subr.bf16.mxu0 0
  %617 = vmatpush1.bf16.msra.mxu0 0
  %618 = vmatprep.subr.bf16.mxu0 0
  %619 = vmatpush1.bf16.msra.mxu0 0
  %620 = vmatprep.mubr.bf16.mxu0 0
  %621 = vmatmul.mubr.bf16.gmra.mrb[0].mxu0 %v570
  %v622 = vpop.f32.mrb[0].mxu0
  %v623 = vadd.f32 0.0, %v622
  %v624 = vpop.f32.mrb[0].mxu0
  %v625 = vadd.f32 0.0, %v624
  %v626 = vpop.f32.mrb[0].mxu0
  %v627 = vadd.f32 0.0, %v626
  %v628 = vpop.f32.mrb[0].mxu0
  %v629 = vadd.f32 0.0, %v628
  %630 = vmatprep.mubr.bf16.mxu0 0
  %631 = vmatmul.mubr.bf16.gmra.mrb[0].mxu0 %v573
  %v632 = vpop.f32.mrb[0].mxu0
  %v633 = vadd.f32 0.0, %v632
  %v634 = vpop.f32.mrb[0].mxu0
  %v635 = vadd.f32 0.0, %v634
  %v636 = vpop.f32.mrb[0].mxu0
  %v637 = vpop.f32.mrb[0].mxu0
  %638 = vdwg.mxu0
  %639 = vmatprep.subr.bf16.mxu0 %v549
  %640 = vmatpush1.bf16.msra.mxu0 %v548
  %641 = vmatprep.subr.bf16.mxu0 %v553
  %642 = vmatpush1.bf16.msra.mxu0 %v552
  %643 = vmatprep.subr.bf16.mxu0 %v557
  %644 = vmatpush1.bf16.msra.mxu0 %v556
  %645 = vmatprep.subr.bf16.mxu0 %v561
  %646 = vmatpush1.bf16.msra.mxu0 %v560
  %647 = vmatprep.subr.bf16.mxu0 %v586
  %648 = vmatpush1.bf16.msra.mxu0 %v583
  %649 = vmatprep.subr.bf16.mxu0 0
  %650 = vmatpush1.bf16.msra.mxu0 0
  %651 = vmatprep.subr.bf16.mxu0 0
  %652 = vmatpush1.bf16.msra.mxu0 0
  %653 = vmatprep.subr.bf16.mxu0 0
  %654 = vmatpush1.bf16.msra.mxu0 0
  %655 = vmatprep.subr.bf16.mxu0 0
  %656 = vmatpush1.bf16.msra.mxu0 0
  %657 = vmatprep.subr.bf16.mxu0 0
  %658 = vmatpush1.bf16.msra.mxu0 0
  %659 = vmatprep.subr.bf16.mxu0 0
  %660 = vmatpush1.bf16.msra.mxu0 0
  %661 = vmatprep.subr.bf16.mxu0 0
  %662 = vmatpush1.bf16.msra.mxu0 0
  %663 = vmatprep.subr.bf16.mxu0 0
  %664 = vmatpush1.bf16.msra.mxu0 0
  %665 = vmatprep.subr.bf16.mxu0 0
  %666 = vmatpush1.bf16.msra.mxu0 0
  %667 = vmatprep.subr.bf16.mxu0 0
  %668 = vmatpush1.bf16.msra.mxu0 0
  %669 = vmatprep.subr.bf16.mxu0 0
  %670 = vmatpush1.bf16.msra.mxu0 0
  %671 = vmatprep.mubr.bf16.mxu0 0
  %672 = vmatmul.mubr.bf16.gmra.mrb[0].mxu0 %v570
  %v673 = vpop.f32.mrb[0].mxu0
  %v674 = vadd.f32 0.0, %v673
  %v675 = vpop.f32.mrb[0].mxu0
  %v676 = vadd.f32 0.0, %v675
  %v677 = vpop.f32.mrb[0].mxu0
  %v678 = vadd.f32 0.0, %v677
  %v679 = vpop.f32.mrb[0].mxu0
  %v680 = vadd.f32 0.0, %v679
  %681 = vmatprep.mubr.bf16.mxu0 0
  %682 = vmatmul.mubr.bf16.gmra.mrb[0].mxu0 %v573
  %v683 = vpop.f32.mrb[0].mxu0
  %v684 = vadd.f32 0.0, %v683
  %v685 = vpop.f32.mrb[0].mxu0
  %v686 = vadd.f32 0.0, %v685
  %v687 = vpop.f32.mrb[0].mxu0
  %v688 = vpop.f32.mrb[0].mxu0
  %689 = vdwg.mxu0
  %691 = vset.pattern.permute.xlu0 0
  %692 = vperm.xlu0 %691, %v41
  %v693 = vpop.permute.xlu0 %692
  %696 = vset.pattern.permute.xlu0 0
  %697 = vperm.xlu0 %696, %v42
  %v698 = vpop.permute.xlu0 %697
  %701 = vset.pattern.permute.xlu0 0
  %702 = vperm.xlu0 %701, %v43
  %v703 = vpop.permute.xlu0 %702
  %v705 = vmul.f32 %v623, %v693
  %v706 = vmul.f32 %v625, %v693
  %v707 = vmul.f32 %v674, %v693
  %v708 = vmul.f32 %v676, %v693
  %v709 = vmul.f32 %v627, %v698
  %v710 = vmul.f32 %v629, %v698
  %v711 = vmul.f32 %v678, %v698
  %v712 = vmul.f32 %v680, %v698
  %v713 = vmul.f32 %v633, %v703
  %v714 = vmul.f32 %v635, %v703
  %v715 = vmul.f32 %v684, %v703
  %v716 = vmul.f32 %v686, %v703
  %718 = vset.pattern.permute.xlu0 0
  %719 = vperm.xlu0 %718, %v45
  %v720 = vpop.permute.xlu0 %719
  %723 = vset.pattern.permute.xlu0 0
  %724 = vperm.xlu0 %723, %v46
  %v725 = vpop.permute.xlu0 %724
  %728 = vset.pattern.permute.xlu0 0
  %729 = vperm.xlu0 %728, %v47
  %v730 = vpop.permute.xlu0 %729
  %v732 = vadd.f32 %v705, %v720
  %v733 = vadd.f32 %v706, %v720
  %v734 = vadd.f32 %v707, %v720
  %v735 = vadd.f32 %v708, %v720
  %v736 = vadd.f32 %v709, %v725
  %v737 = vadd.f32 %v710, %v725
  %v738 = vadd.f32 %v711, %v725
  %v739 = vadd.f32 %v712, %v725
  %v740 = vadd.f32 %v713, %v730
  %v741 = vadd.f32 %v714, %v730
  %v742 = vadd.f32 %v715, %v730
  %v743 = vadd.f32 %v716, %v730
  %v744 = vmax.f32 %v732, 0.0
  %v745 = vmax.f32 %v733, 0.0
  %v746 = vmax.f32 %v734, 0.0
  %v747 = vmax.f32 %v735, 0.0
  %v748 = vmax.f32 %v736, 0.0
  %v749 = vmax.f32 %v737, 0.0
  %v750 = vmax.f32 %v738, 0.0
  %v751 = vmax.f32 %v739, 0.0
  %v752 = vmax.f32 %v740, 0.0
  %v753 = vmax.f32 %v741, 0.0
  %v754 = vmax.f32 %v742, 0.0
  %v755 = vmax.f32 %v743, 0.0
  %756 = vrot.lane.b32.xlu0 %v256, 17
  %v757 = vpop.permute.xlu0 %756
  %758 = vrot.lane.b32.xlu0 %v257, 17
  %v759 = vpop.permute.xlu0 %758
  %760 = vrot.lane.b32.xlu0 %v258, 17
  %v761 = vpop.permute.xlu0 %760
  %762 = vrot.lane.b32.xlu0 %v259, 17
  %v763 = vpop.permute.xlu0 %762
  %v764 = vsel %vm270, %v761, %v763
  %v765 = vsel %vm270, %v759, %v761
  %v766 = vsel %vm270, %v757, %v759
  %v767 = vsel %vm270, %v763, %v757
  %v768 = vmul.f32 %v767, %v278
  %v769 = vmul.f32 %v766, %v282
  %v770 = vmul.f32 %v765, %v286
  %v771 = vmul.f32 %v764, %v290
  %772 = vrot.lane.b32.xlu0 %v256, 16
  %v773 = vpop.permute.xlu0 %772
  %774 = vrot.lane.b32.xlu0 %v257, 16
  %v775 = vpop.permute.xlu0 %774
  %776 = vrot.lane.b32.xlu0 %v258, 16
  %v777 = vpop.permute.xlu0 %776
  %778 = vrot.lane.b32.xlu0 %v259, 16
  %v779 = vpop.permute.xlu0 %778
  %v780 = vsel %vm303, %v777, %v779
  %v781 = vsel %vm303, %v775, %v777
  %v782 = vsel %vm303, %v773, %v775
  %v783 = vsel %vm303, %v779, %v773
  %v784 = vmul.f32 %v783, %v311
  %v785 = vmul.f32 %v782, %v315
  %v786 = vmul.f32 %v781, %v319
  %v787 = vmul.f32 %v780, %v323
  %788 = vrot.lane.b32.xlu0 %v256, 15
  %v789 = vpop.permute.xlu0 %788
  %790 = vrot.lane.b32.xlu0 %v257, 15
  %v791 = vpop.permute.xlu0 %790
  %792 = vrot.lane.b32.xlu0 %v258, 15
  %v793 = vpop.permute.xlu0 %792
  %794 = vrot.lane.b32.xlu0 %v259, 15
  %v795 = vpop.permute.xlu0 %794
  %v796 = vsel %vm336, %v793, %v795
  %v797 = vsel %vm336, %v791, %v793
  %v798 = vsel %vm336, %v789, %v791
  %v799 = vsel %vm336, %v795, %v789
  %v800 = vmul.f32 %v799, %v344
  %v801 = vmul.f32 %v798, %v348
  %v802 = vmul.f32 %v797, %v352
  %v803 = vmul.f32 %v796, %v356
  %804 = vrot.lane.b32.xlu0 %v256, 1
  %v805 = vpop.permute.xlu0 %804
  %806 = vrot.lane.b32.xlu0 %v257, 1
  %v807 = vpop.permute.xlu0 %806
  %808 = vrot.lane.b32.xlu0 %v258, 1
  %v809 = vpop.permute.xlu0 %808
  %810 = vrot.lane.b32.xlu0 %v259, 1
  %v811 = vpop.permute.xlu0 %810
  %v812 = vsel %vm369, %v809, %v811
  %v813 = vsel %vm369, %v807, %v809
  %v814 = vsel %vm369, %v805, %v807
  %v815 = vsel %vm369, %v811, %v805
  %v816 = vmul.f32 %v815, %v377
  %v817 = vmul.f32 %v814, %v381
  %v818 = vmul.f32 %v813, %v385
  %v819 = vmul.f32 %v812, %v389
  %v820 = vmul.f32 %v256, %v397
  %v821 = vmul.f32 %v257, %v401
  %v822 = vmul.f32 %v258, %v405
  %v823 = vmul.f32 %v259, %v409
  %824 = vrot.lane.b32.xlu0 %v256, 127
  %v825 = vpop.permute.xlu0 %824
  %826 = vrot.lane.b32.xlu0 %v257, 127
  %v827 = vpop.permute.xlu0 %826
  %828 = vrot.lane.b32.xlu0 %v258, 127
  %v829 = vpop.permute.xlu0 %828
  %830 = vrot.lane.b32.xlu0 %v259, 127
  %v831 = vpop.permute.xlu0 %830
  %v832 = vsel %vm422, %v829, %v831
  %v833 = vsel %vm422, %v827, %v829
  %v834 = vsel %vm422, %v825, %v827
  %v835 = vsel %vm422, %v831, %v825
  %v836 = vmul.f32 %v834, %v430
  %v837 = vmul.f32 %v833, %v434
  %v838 = vmul.f32 %v832, %v438
  %v839 = vmul.f32 %v835, %v442
  %840 = vrot.lane.b32.xlu0 %v256, 113
  %v841 = vpop.permute.xlu0 %840
  %842 = vrot.lane.b32.xlu0 %v257, 113
  %v843 = vpop.permute.xlu0 %842
  %844 = vrot.lane.b32.xlu0 %v258, 113
  %v845 = vpop.permute.xlu0 %844
  %846 = vrot.lane.b32.xlu0 %v259, 113
  %v847 = vpop.permute.xlu0 %846
  %v848 = vsel %vm455, %v845, %v847
  %v849 = vsel %vm455, %v843, %v845
  %v850 = vsel %vm455, %v841, %v843
  %v851 = vsel %vm455, %v847, %v841
  %v852 = vmul.f32 %v850, %v463
  %v853 = vmul.f32 %v849, %v467
  %v854 = vmul.f32 %v848, %v471
  %v855 = vmul.f32 %v851, %v475
  %856 = vrot.lane.b32.xlu0 %v256, 112
  %v857 = vpop.permute.xlu0 %856
  %858 = vrot.lane.b32.xlu0 %v257, 112
  %v859 = vpop.permute.xlu0 %858
  %860 = vrot.lane.b32.xlu0 %v258, 112
  %v861 = vpop.permute.xlu0 %860
  %862 = vrot.lane.b32.xlu0 %v259, 112
  %v863 = vpop.permute.xlu0 %862
  %v864 = vsel %vm488, %v861, %v863
  %v865 = vsel %vm488, %v859, %v861
  %v866 = vsel %vm488, %v857, %v859
  %v867 = vsel %vm488, %v863, %v857
  %v868 = vmul.f32 %v866, %v496
  %v869 = vmul.f32 %v865, %v500
  %v870 = vmul.f32 %v864, %v504
  %v871 = vmul.f32 %v867, %v508
  %872 = vrot.lane.b32.xlu0 %v256, 111
  %v873 = vpop.permute.xlu0 %872
  %874 = vrot.lane.b32.xlu0 %v257, 111
  %v875 = vpop.permute.xlu0 %874
  %876 = vrot.lane.b32.xlu0 %v258, 111
  %v877 = vpop.permute.xlu0 %876
  %878 = vrot.lane.b32.xlu0 %v259, 111
  %v879 = vpop.permute.xlu0 %878
  %v880 = vsel %vm521, %v877, %v879
  %v881 = vsel %vm521, %v875, %v877
  %v882 = vsel %vm521, %v873, %v875
  %v883 = vsel %vm521, %v879, %v873
  %v884 = vmul.f32 %v882, %v529
  %v885 = vmul.f32 %v881, %v533
  %v886 = vmul.f32 %v880, %v537
  %v887 = vmul.f32 %v883, %v541
  %v888 = vpack.c.bf16 %v784, %v768
  %v889 = vpack.c.bf16 %v785, %v769
  %v890 = vpack.c.bf16 %v786, %v770
  %v891 = vpack.c.bf16 %v787, %v771
  %v892 = vpack.c.bf16 %v816, %v800
  %v893 = vpack.c.bf16 %v817, %v801
  %v894 = vpack.c.bf16 %v818, %v802
  %v895 = vpack.c.bf16 %v819, %v803
  %v896 = vpack.c.bf16 %v836, %v820
  %v897 = vpack.c.bf16 %v837, %v821
  %v898 = vpack.c.bf16 %v838, %v822
  %v899 = vpack.c.bf16 %v839, %v823
  %v900 = vpack.c.bf16 %v868, %v852
  %v901 = vpack.c.bf16 %v869, %v853
  %v902 = vpack.c.bf16 %v870, %v854
  %v903 = vpack.c.bf16 %v871, %v855
  %v904 = vpack.c.bf16 %v884, %v884
  %v905 = vpack.c.bf16 %v885, %v885
  %v906 = vpack.c.bf16 %v886, %v886
  %v907 = vpack.c.bf16 %v887, %v887
  %v908 = vpack.c.bf16 %v52, %v52
  %v910 = vsel %vm568, %v908, 0
  %v913 = vsel %vm575, %v904, 0
  %v916 = vsel %vm575, %v905, 0
  %v919 = vsel %vm575, %v906, 0
  %v922 = vsel %vm575, %v907, 0
  %924 = vmatprep.subr.bf16.mxu0 %v889
  %925 = vmatpush1.bf16.msra.mxu0 %v888
  %926 = vmatprep.subr.bf16.mxu0 %v893
  %927 = vmatpush1.bf16.msra.mxu0 %v892
  %928 = vmatprep.subr.bf16.mxu0 %v897
  %929 = vmatpush1.bf16.msra.mxu0 %v896
  %930 = vmatprep.subr.bf16.mxu0 %v901
  %931 = vmatpush1.bf16.msra.mxu0 %v900
  %932 = vmatprep.subr.bf16.mxu0 %v916
  %933 = vmatpush1.bf16.msra.mxu0 %v913
  %934 = vmatprep.subr.bf16.mxu0 0
  %935 = vmatpush1.bf16.msra.mxu0 0
  %936 = vmatprep.subr.bf16.mxu0 0
  %937 = vmatpush1.bf16.msra.mxu0 0
  %938 = vmatprep.subr.bf16.mxu0 0
  %939 = vmatpush1.bf16.msra.mxu0 0
  %940 = vmatprep.subr.bf16.mxu0 0
  %941 = vmatpush1.bf16.msra.mxu0 0
  %942 = vmatprep.subr.bf16.mxu0 0
  %943 = vmatpush1.bf16.msra.mxu0 0
  %944 = vmatprep.subr.bf16.mxu0 0
  %945 = vmatpush1.bf16.msra.mxu0 0
  %946 = vmatprep.subr.bf16.mxu0 0
  %947 = vmatpush1.bf16.msra.mxu0 0
  %948 = vmatprep.subr.bf16.mxu0 0
  %949 = vmatpush1.bf16.msra.mxu0 0
  %950 = vmatprep.subr.bf16.mxu0 0
  %951 = vmatpush1.bf16.msra.mxu0 0
  %952 = vmatprep.subr.bf16.mxu0 0
  %953 = vmatpush1.bf16.msra.mxu0 0
  %954 = vmatprep.subr.bf16.mxu0 0
  %955 = vmatpush1.bf16.msra.mxu0 0
  %956 = vmatprep.mubr.bf16.mxu0 0
  %957 = vmatmul.mubr.bf16.gmra.mrb[0].mxu0 %v910
  %v958 = vpop.f32.mrb[0].mxu0
  %v959 = vadd.f32 0.0, %v958
  %v960 = vpop.f32.mrb[0].mxu0
  %v961 = vadd.f32 0.0, %v960
  %v962 = vpop.f32.mrb[0].mxu0
  %v963 = vpop.f32.mrb[0].mxu0
  %964 = vdwg.mxu0
  %965 = vmatprep.subr.bf16.mxu0 %v891
  %966 = vmatpush1.bf16.msra.mxu0 %v890
  %967 = vmatprep.subr.bf16.mxu0 %v895
  %968 = vmatpush1.bf16.msra.mxu0 %v894
  %969 = vmatprep.subr.bf16.mxu0 %v899
  %970 = vmatpush1.bf16.msra.mxu0 %v898
  %971 = vmatprep.subr.bf16.mxu0 %v903
  %972 = vmatpush1.bf16.msra.mxu0 %v902
  %973 = vmatprep.subr.bf16.mxu0 %v922
  %974 = vmatpush1.bf16.msra.mxu0 %v919
  %975 = vmatprep.subr.bf16.mxu0 0
  %976 = vmatpush1.bf16.msra.mxu0 0
  %977 = vmatprep.subr.bf16.mxu0 0
  %978 = vmatpush1.bf16.msra.mxu0 0
  %979 = vmatprep.subr.bf16.mxu0 0
  %980 = vmatpush1.bf16.msra.mxu0 0
  %981 = vmatprep.subr.bf16.mxu0 0
  %982 = vmatpush1.bf16.msra.mxu0 0
  %983 = vmatprep.subr.bf16.mxu0 0
  %984 = vmatpush1.bf16.msra.mxu0 0
  %985 = vmatprep.subr.bf16.mxu0 0
  %986 = vmatpush1.bf16.msra.mxu0 0
  %987 = vmatprep.subr.bf16.mxu0 0
  %988 = vmatpush1.bf16.msra.mxu0 0
  %989 = vmatprep.subr.bf16.mxu0 0
  %990 = vmatpush1.bf16.msra.mxu0 0
  %991 = vmatprep.subr.bf16.mxu0 0
  %992 = vmatpush1.bf16.msra.mxu0 0
  %993 = vmatprep.subr.bf16.mxu0 0
  %994 = vmatpush1.bf16.msra.mxu0 0
  %995 = vmatprep.subr.bf16.mxu0 0
  %996 = vmatpush1.bf16.msra.mxu0 0
  %997 = vmatprep.mubr.bf16.mxu0 0
  %998 = vmatmul.mubr.bf16.gmra.mrb[0].mxu0 %v910
  %v999 = vpop.f32.mrb[0].mxu0
  %v1000 = vadd.f32 0.0, %v999
  %v1001 = vpop.f32.mrb[0].mxu0
  %v1002 = vadd.f32 0.0, %v1001
  %v1003 = vpop.f32.mrb[0].mxu0
  %v1004 = vpop.f32.mrb[0].mxu0
  %1005 = vdwg.mxu0
  %1007 = vset.pattern.permute.xlu0 0
  %1008 = vperm.xlu0 %1007, %v44
  %v1009 = vpop.permute.xlu0 %1008
  %v1011 = vmul.f32 %v959, %v1009
  %v1012 = vmul.f32 %v961, %v1009
  %v1013 = vmul.f32 %v1000, %v1009
  %v1014 = vmul.f32 %v1002, %v1009
  %1016 = vset.pattern.permute.xlu0 0
  %1017 = vperm.xlu0 %1016, %v48
  %v1018 = vpop.permute.xlu0 %1017
  %v1020 = vadd.f32 %v1011, %v1018
  %v1021 = vadd.f32 %v1012, %v1018
  %v1022 = vadd.f32 %v1013, %v1018
  %v1023 = vadd.f32 %v1014, %v1018
  %v1024 = vmax.f32 %v1020, 0.0
  %v1025 = vmax.f32 %v1021, 0.0
  %v1026 = vmax.f32 %v1022, 0.0
  %v1027 = vmax.f32 %v1023, 0.0
  %v1028 = vadd.f32 %v744, %v1024
  %v1029 = vadd.f32 %v745, %v1025
  %v1030 = vadd.f32 %v746, %v1026
  %v1031 = vadd.f32 %v747, %v1027
  %v1032 = vadd.f32 %v748, %v256
  %v1033 = vadd.f32 %v749, %v257
  %v1034 = vadd.f32 %v750, %v258
  %v1035 = vadd.f32 %v751, %v259
  %v1036 = vadd.f32 %v752, %v256
  %v1037 = vadd.f32 %v753, %v257
  %v1038 = vadd.f32 %v754, %v258
  %v1039 = vadd.f32 %v755, %v259
  %1040 = vst [vmem:[%s5] sm:$0xff] %v1028
  %1041 = vst [vmem:[%s5 + $0x8] sm:$0xff] %v1029
  %1042 = vst [vmem:[%s5 + $0x10] sm:$0xff] %v1030
  %1043 = vst [vmem:[%s5 + $0x18] sm:$0xff] %v1031
  %1044 = vst [vmem:[%s5 + $0x20] sm:$0xff] %v1032
  %1045 = vst [vmem:[%s5 + $0x28] sm:$0xff] %v1033
  %1046 = vst [vmem:[%s5 + $0x30] sm:$0xff] %v1034
  %1047 = vst [vmem:[%s5 + $0x38] sm:$0xff] %v1035
  %1048 = vst [vmem:[%s5 + $0x40] sm:$0xff] %v1036
  %1049 = vst [vmem:[%s5 + $0x48] sm:$0xff] %v1037
  %1050 = vst [vmem:[%s5 + $0x50] sm:$0xff] %v1038
  %1051 = vst [vmem:[%s5 + $0x58] sm:$0xff] %v1039
  // Predicated region
  $region22: #{_lambda_.1} parent=0 // pred_check
    _
  $region23: #{_lambda_.1} parent=0 // pred_check_branch
    %1053 = sbr.rel (0) target = $region25
  $region24: #{_lambda_.1} parent=0 // pred_region
    _
  $region25: #{_lambda_.1} parent=0 // pred_fallthru
    _
  // Predicated region
  $region26: #{_lambda_.1} parent=0 // pred_check
    _
  $region27: #{_lambda_.1} parent=0 // pred_check_branch
    %1055 = sbr.rel (0) target = $region29
  $region28: #{_lambda_.1} parent=0 // pred_region
    _
  $region29: #{_lambda_.1} parent=0 // pred_fallthru
    _

</llo_original>
